<compile_context>
chip_gen: v6e
topology: v6e:2x2x1
jax: 0.10.0
libtpu: 0.0.40
codegen_flags: <defaults>
</compile_context>

<pallas_src>
import math
import numpy as np
import jax
import jax.numpy as jnp
from jax.experimental import pallas as pl
from jax.experimental.pallas import tpu as pltpu

# Module hyper-parameters (globals `sr` and `frame_size` in the original file).
SR = 16000
FRAME_SIZE = 256                    # lane-friendly (2 x 128 lanes)
OUT_WIDTH = FRAME_SIZE + 1          # [hi_recon | prob]
TWO_PI = 2.0 * math.pi

# Even Taylor coefficients of cos(2*pi*r) in u = r**2; truncation error < 4e-9
# for |r| <= 0.5 (i.e. after the mod-1 range reduction).
#   c_k = (-1)^k * (2*pi)^(2k) / (2k)!
_COS2PI_COEFFS = tuple(
    ((-1.0) ** k) * (TWO_PI ** (2 * k)) / math.factorial(2 * k) for k in range(10)
)


def _round_up(x: int, m: int) -> int:
    return ((x + m - 1) // m) * m


def _multi_tc_hint() -> bool:
    """True on parts with 2 TensorCores per device (v4/v5p megacore, v7x)."""
    try:
        kind = jax.devices()[0].device_kind.lower()
    except Exception:
        return False
    return ("v4" in kind) or ("v5p" in kind) or ("v7" in kind)


def _cos_2pi(r):
    """cos(2*pi*r) for |r| <= 0.5 via an even Horner polynomial (pure VALU)."""
    u = r * r
    acc = jnp.float32(_COS2PI_COEFFS[-1])
    for c in reversed(_COS2PI_COEFFS[:-1]):
        acc = acc * u + jnp.float32(c)
    return acc


def _harmonic_ae_kernel(pos_ref, f0_ref, prob_ref, z_ref):
    """One row-tile of the forward pass.

    pos_ref  : (1, FRAME_SIZE)      positional coding in Hz (unscaled), resident
    f0_ref   : (tm, 1)              fundamental frequencies
    prob_ref : (tm, 1)              voicing probabilities
    z_ref    : (tm, FRAME_SIZE + 1) output [cos(pos * 2*pi / f0), prob]
    """
    # One exact f32 divide per ROW (lane-sparse, hidden under the cos work),
    # then a pure broadcast multiply over the (tm, 256) tile.
    inv_f0 = jnp.float32(1.0) / f0_ref[...]              # (tm, 1)
    t = pos_ref[...] * inv_f0                            # (tm, 256) phase in cycles
    # mod-1 range reduction: r in [-0.5, 0.5); cos is 1-periodic in cycles.
    r = t - jnp.floor(t + jnp.float32(0.5))
    z_ref[:, :FRAME_SIZE] = _cos_2pi(r)                  # lane-dense 256-wide store
    z_ref[:, FRAME_SIZE:] = prob_ref[...]                # fused prob column


def harmonic_ae_forward(pos, f0, prob, *, tm=4096):
    """pos: (1, FRAME_SIZE); f0, prob: any shapes with the same element count N.

    Returns z of shape (N, FRAME_SIZE + 1) = [cos(pos * 2*pi / f0), prob],
    matching torch.cat((hi_recon, prob), dim=1) in the reference forward.
    """
    f0_2d = jnp.reshape(f0, (-1, 1)).astype(jnp.float32)
    prob_2d = jnp.reshape(prob, (-1, 1)).astype(jnp.float32)
    pos_2d = jnp.reshape(pos, (1, FRAME_SIZE)).astype(jnp.float32)
    n = f0_2d.shape[0]

    # --- row tile selection -------------------------------------------------
    # Multiple of 8 (sublane), capped at the requested tm and at the (rounded)
    # problem size.  No divisibility requirement: the grid is ragged-safe.
    n8 = _round_up(max(n, 1), 8)
    tm_eff = _round_up(max(8, min(int(tm), n8)), 8)
    # Only on 2-TC devices: make sure the "parallel" row axis has >= 2 steps so
    # both TensorCores get work (on single-TC chips this would just add
    # per-step overhead).
    if _multi_tc_hint() and n8 >= 16 and pl.cdiv(n, tm_eff) < 2:
        tm_eff = max(8, _round_up((n8 + 1) // 2, 8))

    grid = (pl.cdiv(n, tm_eff),)

    z = pl.pallas_call(
        _harmonic_ae_kernel,
        out_shape=jax.ShapeDtypeStruct((n, OUT_WIDTH), jnp.float32),
        grid_spec=pltpu.PrefetchScalarGridSpec(
            num_scalar_prefetch=0,
            grid=grid,
            in_specs=[
                # positional coding: tiny constant tile, same block every step
                # (not re-DMAed).
                pl.BlockSpec((1, FRAME_SIZE), lambda i: (0, 0)),
                # f0 / prob rows for this tile.
                pl.BlockSpec((tm_eff, 1), lambda i: (i, 0)),
                pl.BlockSpec((tm_eff, 1), lambda i: (i, 0)),
            ],
            # Full-width (257) output block: last dim equals the array width,
            # so the BlockSpec is accepted; columns 0..255 are unmasked
            # full-vreg stores, column 256 is a masked single-lane store.
            out_specs=pl.BlockSpec((tm_eff, OUT_WIDTH), lambda i: (i, 0)),
        ),
        compiler_params=pltpu.CompilerParams(
            dimension_semantics=("parallel",),
        ),
    )(pos_2d, f0_2d, prob_2d)
    return z


if __name__ == "__main__":
    # Deterministic parameter init (same formula as the nn.Parameter in __init__).
    pos_np = np.linspace(0.0, SR / 2, num=FRAME_SIZE, endpoint=True).reshape((1, -1))
    pos = jnp.asarray(pos_np, dtype=jnp.float32)

    # Small example inputs: batch=2, frames-per-item=8 -> N = 16 rows.
    key = jax.random.PRNGKey(0)
    k_f0, k_prob = jax.random.split(key)
    f0 = jax.random.uniform(k_f0, (2, 8), dtype=jnp.float32, minval=80.0, maxval=400.0)
    prob = jax.random.uniform(k_prob, (2, 8), dtype=jnp.float32)

    z = harmonic_ae_forward(pos, f0, prob)
    z = jax.block_until_ready(z)

    # Sanity check against a pure-JAX f32 reference of the same forward.
    # Tolerance 1e-3: phases reach ~628 rad for f0 ~ 80 Hz; the in-kernel mod-1
    # reduction and the reference's generic cos() round the phase differently
    # by a few f32 ulps, which cos amplifies to ~1e-4 absolute.
    f0_r = jnp.reshape(f0, (-1, 1))
    prob_r = jnp.reshape(prob, (-1, 1))
    hi_ref = jnp.cos(pos * TWO_PI / f0_r)
    z_ref = jnp.concatenate([hi_ref, prob_r], axis=1)
    np.testing.assert_allclose(np.asarray(z), np.asarray(z_ref), rtol=1e-3, atol=1e-3)

    assert z.shape == (16, OUT_WIDTH)
    print("KERNEL_OK")
</pallas_src>

<mosaic_0001>
module attributes {stable_mosaic.version = 11 : i64} {
  func.func @_harmonic_ae_kernel(%arg0: i32, %arg1: memref<1x256xf32, #tpu.memory_space<vmem>>, %arg2: memref<16x1xf32, #tpu.memory_space<vmem>>, %arg3: memref<16x1xf32, #tpu.memory_space<vmem>>, %arg4: memref<16x257xf32, #tpu.memory_space<vmem>>) attributes {dimension_semantics = [#tpu.dimension_semantics<parallel>], iteration_bounds = array<i64: 1>, scalar_prefetch = 0 : i64, scratch_operands = 0 : i64, tpu.core_type = #tpu.core_type<tc>, window_params = [{pipeline_mode = #tpu.pipeline_mode<synchronous>, transform_indices = @transform_0, window_bounds = array<i64: 1, 256>}, {transform_indices = @transform_1, window_bounds = array<i64: 16, 1>}, {transform_indices = @transform_2, window_bounds = array<i64: 16, 1>}, {transform_indices = @transform_3, window_bounds = array<i64: 16, 257>}]} {
    %c0 = arith.constant 0 : index
    %c0_0 = arith.constant 0 : index
    %0 = vector.load %arg2[%c0, %c0_0] : memref<16x1xf32, #tpu.memory_space<vmem>>, vector<16x1xf32>
    %cst = arith.constant 1.000000e+00 : f32
    %1 = vector.broadcast %cst : f32 to vector<16x1xf32>
    %2 = arith.divf %1, %0 : vector<16x1xf32>
    %c0_1 = arith.constant 0 : index
    %c0_2 = arith.constant 0 : index
    %3 = vector.load %arg1[%c0_1, %c0_2] : memref<1x256xf32, #tpu.memory_space<vmem>>, vector<1x256xf32>
    %4 = vector.broadcast %3 : vector<1x256xf32> to vector<16x256xf32>
    %5 = vector.broadcast %2 : vector<16x1xf32> to vector<16x256xf32>
    %6 = arith.mulf %4, %5 : vector<16x256xf32>
    %cst_3 = arith.constant 5.000000e-01 : f32
    %7 = vector.broadcast %cst_3 : f32 to vector<16x256xf32>
    %8 = arith.addf %6, %7 : vector<16x256xf32>
    %9 = math.floor %8 : vector<16x256xf32>
    %10 = arith.subf %6, %9 : vector<16x256xf32>
    %11 = arith.mulf %10, %10 : vector<16x256xf32>
    %cst_4 = arith.constant -0.0363828428 : f32
    %12 = vector.broadcast %cst_4 : f32 to vector<16x256xf32>
    %13 = arith.mulf %12, %11 : vector<16x256xf32>
    %cst_5 = arith.constant 0.282005966 : f32
    %14 = vector.broadcast %cst_5 : f32 to vector<16x256xf32>
    %15 = arith.addf %13, %14 : vector<16x256xf32>
    %16 = arith.mulf %15, %11 : vector<16x256xf32>
    %cst_6 = arith.constant -1.71439075 : f32
    %17 = vector.broadcast %cst_6 : f32 to vector<16x256xf32>
    %18 = arith.addf %16, %17 : vector<16x256xf32>
    %19 = arith.mulf %18, %11 : vector<16x256xf32>
    %cst_7 = arith.constant 7.90353632 : f32
    %20 = vector.broadcast %cst_7 : f32 to vector<16x256xf32>
    %21 = arith.addf %19, %20 : vector<16x256xf32>
    %22 = arith.mulf %21, %11 : vector<16x256xf32>
    %cst_8 = arith.constant -26.4262562 : f32
    %23 = vector.broadcast %cst_8 : f32 to vector<16x256xf32>
    %24 = arith.addf %22, %23 : vector<16x256xf32>
    %25 = arith.mulf %24, %11 : vector<16x256xf32>
    %cst_9 = arith.constant 60.2446404 : f32
    %26 = vector.broadcast %cst_9 : f32 to vector<16x256xf32>
    %27 = arith.addf %25, %26 : vector<16x256xf32>
    %28 = arith.mulf %27, %11 : vector<16x256xf32>
    %cst_10 = arith.constant -85.4568176 : f32
    %29 = vector.broadcast %cst_10 : f32 to vector<16x256xf32>
    %30 = arith.addf %28, %29 : vector<16x256xf32>
    %31 = arith.mulf %30, %11 : vector<16x256xf32>
    %cst_11 = arith.constant 64.9393921 : f32
    %32 = vector.broadcast %cst_11 : f32 to vector<16x256xf32>
    %33 = arith.addf %31, %32 : vector<16x256xf32>
    %34 = arith.mulf %33, %11 : vector<16x256xf32>
    %cst_12 = arith.constant -19.7392082 : f32
    %35 = vector.broadcast %cst_12 : f32 to vector<16x256xf32>
    %36 = arith.addf %34, %35 : vector<16x256xf32>
    %37 = arith.mulf %36, %11 : vector<16x256xf32>
    %cst_13 = arith.constant 1.000000e+00 : f32
    %38 = vector.broadcast %cst_13 : f32 to vector<16x256xf32>
    %39 = arith.addf %37, %38 : vector<16x256xf32>
    %c0_14 = arith.constant 0 : index
    %c0_15 = arith.constant 0 : index
    %40 = vector.load %arg4[%c0_14, %c0_15] : memref<16x257xf32, #tpu.memory_space<vmem>>, vector<16x256xf32>
    tpu.vector_store %arg4[%c0_14, %c0_15], %39 {strides = array<i32>} : memref<16x257xf32, #tpu.memory_space<vmem>>, vector<16x256xf32>,
    %c0_16 = arith.constant 0 : index
    %c0_17 = arith.constant 0 : index
    %41 = vector.load %arg3[%c0_16, %c0_17] : memref<16x1xf32, #tpu.memory_space<vmem>>, vector<16x1xf32>
    %c0_18 = arith.constant 0 : index
    %c256 = arith.constant 256 : index
    %42 = vector.load %arg4[%c0_18, %c256] : memref<16x257xf32, #tpu.memory_space<vmem>>, vector<16x1xf32>
    tpu.vector_store %arg4[%c0_18, %c256], %41 {strides = array<i32>} : memref<16x257xf32, #tpu.memory_space<vmem>>, vector<16x1xf32>,
    return
  }
  func.func @transform_0(%arg0: i32) -> (i32, i32) {
    %c0_i32 = arith.constant 0 : i32
    %c0_i32_0 = arith.constant 0 : i32
    %c0_i32_1 = arith.constant 0 : i32
    return %c0_i32, %c0_i32_0 : i32, i32
  }
  func.func @transform_1(%arg0: i32) -> (i32, i32) {
    %c0_i32 = arith.constant 0 : i32
    %c0_i32_0 = arith.constant 0 : i32
    return %arg0, %c0_i32 : i32, i32
  }
  func.func @transform_2(%arg0: i32) -> (i32, i32) {
    %c0_i32 = arith.constant 0 : i32
    %c0_i32_0 = arith.constant 0 : i32
    return %arg0, %c0_i32 : i32, i32
  }
  func.func @transform_3(%arg0: i32) -> (i32, i32) {
    %c0_i32 = arith.constant 0 : i32
    %c0_i32_0 = arith.constant 0 : i32
    return %arg0, %c0_i32 : i32, i32
  }
}

</mosaic_0001>

<llo_original>
// kernel: tpu_custom_call.1
$region0: #{tpu_custom_call.1}
  #allocation0 [shape = 'u32[]', space=smem, size = 0x4, offset = 0x4, fixed_abs, tag = 'smem constant byte address 0x4 - core index']
  #allocation1 [shape = 'u32[144,128]{1,0:T(1,128)}', space=vmem, size = 0x12000, scoped, tag = 'internal scratch']
  %s0 = inlined_call_operand.vmem [shape: f32[1,256], index: 0, kind: input, shape index: {}]
  %s1 = inlined_call_operand.vmem [shape: f32[16,1], index: 1, kind: input, shape index: {}]
  %s2 = inlined_call_operand.vmem [shape: f32[16,1], index: 2, kind: input, shape index: {}]
  %s3 = inlined_call_operand.hbm [shape: f32[16,257], index: 3, kind: output, shape index: {}]
  %s4 = sld [smem:[#allocation0]]
  $region22: #{tpu_custom_call.1} parent=0
    _
  %s6 = ssub.s32 1, %s4
  %s7 = scalar_select 0, %s6, %s4
  $region1: #{tpu_custom_call.1} parent=0
    #allocation2 [shape = 'u8[24576]{0}', space=vmem, size = 0x6000, scoped, tag = 'output window, operand 0, single buffered']
    #allocation3 [shape = 's32[1]{0}', space=sflag, size = 0x4, scoped, tag = 'scoped memory for tpu_custom_call.1']
    %8 = vsyncpa [#allocation3], 0
    // Predicated region
    $region2: #{tpu_custom_call.1} parent=1 // pred_check
      _
    $region3: #{tpu_custom_call.1} parent=1 // pred_check_branch
      %10 = sbr.rel (0) target = $region5
    $region4: #{tpu_custom_call.1} parent=1 // pred_region
      _
    $region5: #{tpu_custom_call.1} parent=1 // pred_fallthru
      _
    // Predicated region
    $region6: #{tpu_custom_call.1} parent=1 // pred_check
      _
    $region7: #{tpu_custom_call.1} parent=1 // pred_check_branch
      %12 = sbr.rel (0) target = $region9
    $region8: #{tpu_custom_call.1} parent=1 // pred_region
      _
    $region9: #{tpu_custom_call.1} parent=1 // pred_fallthru
      _
    // Predicated region
    $region10: #{tpu_custom_call.1} parent=1 // pred_check
      _
    $region11: #{tpu_custom_call.1} parent=1 // pred_check_branch
      %14 = sbr.rel (0) target = $region13
    $region12: #{tpu_custom_call.1} parent=1 // pred_region
      _
    $region13: #{tpu_custom_call.1} parent=1 // pred_fallthru
      _
    %v15 = vld [vmem:[%s1] sm:$0xff]
    %v16 = vld [vmem:[%s1 + $0x8] sm:$0xff]
    %v17 = vrcp.pop %v15
    %v18 = vmul.f32 1.0, %v17
    %v19 = vrcp.pop %v16
    %v20 = vmul.f32 1.0, %v19
    %v21 = vld [vmem:[%s0] sm:$0x3]
    %v23 = vlaneseq
    %v24 = vshrl.u32 %v23, 7
    %v25 = vsub.s32 0, %v24
    %v26 = vrot.slane %v21, %v25
    %v27 = vlaneseq
    %v28 = vshrl.u32 %v27, 7
    %v29 = vsub.s32 1, %v28
    %v30 = vrot.slane %v21, %v29
    %34 = vset.pattern.permute.xlu0 0
    %35 = vperm.xlu0 %34, %v18
    %v36 = vpop.permute.xlu0 %35
    %39 = vset.pattern.permute.xlu0 0
    %40 = vperm.xlu0 %39, %v20
    %v41 = vpop.permute.xlu0 %40
    %v43 = vmul.f32 %v26, %v36
    %v44 = vmul.f32 %v30, %v36
    %v45 = vmul.f32 %v26, %v41
    %v46 = vmul.f32 %v30, %v41
    %v47 = vadd.f32 %v43, 0.5
    %v48 = vadd.f32 %v44, 0.5
    %v49 = vadd.f32 %v45, 0.5
    %v50 = vadd.f32 %v46, 0.5
    %v51 = vfloor.f32 %v47
    %v52 = vfloor.f32 %v48
    %v53 = vfloor.f32 %v49
    %v54 = vfloor.f32 %v50
    %v55 = vsub.f32 %v43, %v51
    %v56 = vsub.f32 %v44, %v52
    %v57 = vsub.f32 %v45, %v53
    %v58 = vsub.f32 %v46, %v54
    %v59 = vmul.f32 %v55, %v55
    %v60 = vmul.f32 %v56, %v56
    %v61 = vmul.f32 %v57, %v57
    %v62 = vmul.f32 %v58, %v58
    %v63 = vmul.f32 %v59, -0.036382843
    %v64 = vmul.f32 %v60, -0.036382843
    %v65 = vmul.f32 %v61, -0.036382843
    %v66 = vmul.f32 %v62, -0.036382843
    %v67 = vadd.f32 %v63, 0.28200597
    %v68 = vadd.f32 %v64, 0.28200597
    %v69 = vadd.f32 %v65, 0.28200597
    %v70 = vadd.f32 %v66, 0.28200597
    %v71 = vmul.f32 %v67, %v59
    %v72 = vmul.f32 %v68, %v60
    %v73 = vmul.f32 %v69, %v61
    %v74 = vmul.f32 %v70, %v62
    %v75 = vadd.f32 %v71, -1.7143908
    %v76 = vadd.f32 %v72, -1.7143908
    %v77 = vadd.f32 %v73, -1.7143908
    %v78 = vadd.f32 %v74, -1.7143908
    %v79 = vmul.f32 %v75, %v59
    %v80 = vmul.f32 %v76, %v60
    %v81 = vmul.f32 %v77, %v61
    %v82 = vmul.f32 %v78, %v62
    %v83 = vadd.f32 %v79, 7.9035363
    %v84 = vadd.f32 %v80, 7.9035363
    %v85 = vadd.f32 %v81, 7.9035363
    %v86 = vadd.f32 %v82, 7.9035363
    %v87 = vmul.f32 %v83, %v59
    %v88 = vmul.f32 %v84, %v60
    %v89 = vmul.f32 %v85, %v61
    %v90 = vmul.f32 %v86, %v62
    %v91 = vadd.f32 %v87, -26.426256
    %v92 = vadd.f32 %v88, -26.426256
    %v93 = vadd.f32 %v89, -26.426256
    %v94 = vadd.f32 %v90, -26.426256
    %v95 = vmul.f32 %v91, %v59
    %v96 = vmul.f32 %v92, %v60
    %v97 = vmul.f32 %v93, %v61
    %v98 = vmul.f32 %v94, %v62
    %v99 = vadd.f32 %v95, 60.24464
    %v100 = vadd.f32 %v96, 60.24464
    %v101 = vadd.f32 %v97, 60.24464
    %v102 = vadd.f32 %v98, 60.24464
    %v103 = vmul.f32 %v99, %v59
    %v104 = vmul.f32 %v100, %v60
    %v105 = vmul.f32 %v101, %v61
    %v106 = vmul.f32 %v102, %v62
    %v107 = vadd.f32 %v103, -85.45682
    %v108 = vadd.f32 %v104, -85.45682
    %v109 = vadd.f32 %v105, -85.45682
    %v110 = vadd.f32 %v106, -85.45682
    %v111 = vmul.f32 %v107, %v59
    %v112 = vmul.f32 %v108, %v60
    %v113 = vmul.f32 %v109, %v61
    %v114 = vmul.f32 %v110, %v62
    %v115 = vadd.f32 %v111, 64.93939
    %v116 = vadd.f32 %v112, 64.93939
    %v117 = vadd.f32 %v113, 64.93939
    %v118 = vadd.f32 %v114, 64.93939
    %v119 = vmul.f32 %v115, %v59
    %v120 = vmul.f32 %v116, %v60
    %v121 = vmul.f32 %v117, %v61
    %v122 = vmul.f32 %v118, %v62
    %v123 = vadd.f32 %v119, -19.739208
    %v124 = vadd.f32 %v120, -19.739208
    %v125 = vadd.f32 %v121, -19.739208
    %v126 = vadd.f32 %v122, -19.739208
    %v127 = vmul.f32 %v123, %v59
    %v128 = vmul.f32 %v124, %v60
    %v129 = vmul.f32 %v125, %v61
    %v130 = vmul.f32 %v126, %v62
    %v131 = vadd.f32 %v127, 1.0
    %v132 = vadd.f32 %v128, 1.0
    %v133 = vadd.f32 %v129, 1.0
    %v134 = vadd.f32 %v130, 1.0
    %135 = vst [vmem:[#allocation2] sm:$0xff] %v131
    %136 = vst [vmem:[#allocation2 + $0x8] sm:$0xff] %v132
    %137 = vst [vmem:[#allocation2 + $0x18] sm:$0xff] %v133
    %138 = vst [vmem:[#allocation2 + $0x20] sm:$0xff] %v134
    %v139 = vld [vmem:[%s2] sm:$0xff]
    %v140 = vld [vmem:[%s2 + $0x8] sm:$0xff]
    %vm141 = vcmask 7168
    %142 = vst.msk [vmem:[#allocation2 + $0x10] sm:$0xff] %vm141, %v139
    %143 = vst.msk [vmem:[#allocation2 + $0x28] sm:$0xff] %vm141, %v140
    // Predicated region
    $region14: #{tpu_custom_call.1} parent=1 // pred_check
      _
    $region15: #{tpu_custom_call.1} parent=1 // pred_check_branch
      %145 = sbr.rel (0) target = $region17
    $region16: #{tpu_custom_call.1} parent=1 // pred_region
      %s147 = ssub.s32 768, 768
      %148 = vsyncadd [#allocation3], %s147
      %s149 = sshll.u32 [#allocation2], 4
      %s150 = int_to_ptr.vmem [resolvable:$true] %s149
      %155 = dma.vmem_to_hbm [thread:$0]  %s150, 768, %s3, [#allocation3], 384, 384, 24
    $region17: #{tpu_custom_call.1} parent=1 // pred_fallthru
      _
    // Predicated region
    $region18: #{tpu_custom_call.1} parent=1 // pred_check
      _
    $region19: #{tpu_custom_call.1} parent=1 // pred_check_branch
      %157 = sbr.rel (0) target = $region21
    $region20: #{tpu_custom_call.1} parent=1 // pred_region
      %158 = dma.done [#allocation3], 768
    $region21: #{tpu_custom_call.1} parent=1 // pred_fallthru
      _
    %159 = vsyncpa [#allocation3], 1

</llo_original>
